<compile_context>
chip_gen: v7x
topology: tpu7x:2x2x1
jax: 0.10.0
libtpu: 0.0.40
codegen_flags: <defaults>
</compile_context>

<pallas_src>
import math

import jax
import jax.numpy as jnp
from jax.experimental import pallas as pl
from jax.experimental.pallas import tpu as pltpu


# ----------------------------------------------------------------------------
# Fused Pallas kernel: ChebConv layer 1 -> ChebConv layer 2 -> 1x1 conv + log_softmax
# ----------------------------------------------------------------------------
def fused_chebnet_kernel(m_ref, xc_ref, w1_ref, b1_ref, w2_ref, b2_ref,
                         wct_r_ref, wct_i_ref, bc_ref, o_ref):
    """m_ref:  ((K+1)*2N, 2N) block-complex Chebyshev-Laplacian stack (torch real/imag swap
               already applied in the wrapper, i.e. built from mul_L_real = L.imag, mul_L_imag = L.real)
       xc_ref: (2N, C_in) = [X_real; X_imag]
       w*_ref: (K+1, C_in, C_out) ChebConv weights, b*_ref: (1, C_out) biases
       wct_*:  (F, label_dim) halves of Wc^T, bc_ref: (1, label_dim)
       o_ref:  (N, label_dim) log-softmax output."""
    Kp1 = w1_ref.shape[0]
    twoN = xc_ref.shape[0]
    N = twoN // 2

    M = m_ref[...]                       # ((K+1)*2N, 2N)
    Xc = xc_ref[...]                     # (2N, C_in)

    # ---- ChebConv layer 1: one fat Laplacian matmul, then per-k weight apply (W factored out) ----
    prop = jnp.dot(M, Xc, preferred_element_type=jnp.float32)          # ((K+1)*2N, C_in)
    h = jnp.dot(prop[0:twoN, :], w1_ref[0], preferred_element_type=jnp.float32)
    for k in range(1, Kp1):                                            # static unroll, K+1 = 3
        h = h + jnp.dot(prop[k * twoN:(k + 1) * twoN, :], w1_ref[k],
                        preferred_element_type=jnp.float32)
    h = h + b1_ref[...]                  # bias added to BOTH real & imag halves (matches torch)

    # ---- ChebConv layer 2 (same Laplacian, as in the reference net) ----
    prop2 = jnp.dot(M, h, preferred_element_type=jnp.float32)          # ((K+1)*2N, F)
    h2 = jnp.dot(prop2[0:twoN, :], w2_ref[0], preferred_element_type=jnp.float32)
    for k in range(1, Kp1):
        h2 = h2 + jnp.dot(prop2[k * twoN:(k + 1) * twoN, :], w2_ref[k],
                          preferred_element_type=jnp.float32)
    h2 = h2 + b2_ref[...]

    # ---- classifier: cat([real, imag]) @ Wc^T + bc, done as two half-matmuls (no concat) ----
    r = h2[0:N, :]
    im = h2[N:twoN, :]
    logits = (jnp.dot(r, wct_r_ref[...], preferred_element_type=jnp.float32)
              + jnp.dot(im, wct_i_ref[...], preferred_element_type=jnp.float32)
              + bc_ref[...])

    # numerically-stable log_softmax over the label axis
    mx = jnp.max(logits, axis=-1, keepdims=True)
    z = logits - mx
    lse = jnp.log(jnp.sum(jnp.exp(z), axis=-1, keepdims=True))
    o_ref[...] = z - lse


# ----------------------------------------------------------------------------
# Plain-JAX glue: Hermitian (magnetic) Laplacian + Chebyshev polynomial stacks
# ----------------------------------------------------------------------------
def hermitian_cheb_stacks(edges, q, edge_weight, N, K=2, max_eigen=2.0):
    """Dense equivalent of QinDirect_hermitian_decomp_sparse + cheb_poly_sparse(L, K).

    Returns (real_stack, imag_stack), each (K+1, N, N) float32.
    """
    # TODO(synk): QinDirect_hermitian_decomp_sparse source was not provided; this follows the
    # standard MagNet hermitian decomposition (norm=True, laplacian=True, gcn_appr=False).
    row, col = edges[0], edges[1]
    A = jnp.zeros((N, N), jnp.float32).at[row, col].add(edge_weight)
    A_sym = 0.5 * (A + A.T)
    d = A_sym.sum(axis=0)
    d = jnp.where(d == 0, 1.0, d)
    d_inv_sqrt = d ** -0.5
    A_sym = d_inv_sqrt[:, None] * A_sym * d_inv_sqrt[None, :]

    theta = 2.0 * jnp.pi * q * (A - A.T)          # phase matrix
    I = jnp.eye(N, dtype=jnp.float32)
    # L = I - exp(i*theta) .* A_sym ; then normalized L <- (2/max_eigen) L - I
    L_real = I - jnp.cos(theta) * A_sym
    L_imag = -jnp.sin(theta) * A_sym
    scale = 2.0 / max_eigen
    L_real = scale * L_real - I
    L_imag = scale * L_imag

    # Chebyshev: T0 = I, T1 = L, T_k = 2 L T_{k-1} - T_{k-2}   (complex, in real arithmetic)
    polys_r = [I, L_real]
    polys_i = [jnp.zeros((N, N), jnp.float32), L_imag]
    for _ in range(2, K + 1):
        pr, pi = polys_r[-1], polys_i[-1]
        nr = 2.0 * (L_real @ pr - L_imag @ pi) - polys_r[-2]
        ni = 2.0 * (L_real @ pi + L_imag @ pr) - polys_i[-2]
        polys_r.append(nr)
        polys_i.append(ni)
    return jnp.stack(polys_r), jnp.stack(polys_i)


def build_block_complex_stack(L_real_stack, L_imag_stack):
    """Build the vertically stacked block-complex operator from the Cheb stacks.

    Faithful to the torch forward swap: mul_L_real = L.imag, mul_L_imag = L.real.
    Per k:  M_k = [[mul_L_real_k, -mul_L_imag_k], [mul_L_imag_k, mul_L_real_k]]  (2N, 2N)
    Returned shape: ((K+1)*2N, 2N).
    """
    mul_L_real = L_imag_stack
    mul_L_imag = L_real_stack
    top = jnp.concatenate([mul_L_real, -mul_L_imag], axis=2)   # (K+1, N, 2N)
    bot = jnp.concatenate([mul_L_imag, mul_L_real], axis=2)    # (K+1, N, 2N)
    M = jnp.concatenate([top, bot], axis=1)                    # (K+1, 2N, 2N)
    Kp1, twoN, _ = M.shape
    return M.reshape(Kp1 * twoN, twoN)


# ----------------------------------------------------------------------------
# Forward: single fused pallas_call for the whole network
# ----------------------------------------------------------------------------
def chebnet_forward(real, imag, edges, q, edge_weight, params, K=2):
    N = real.shape[0]
    Lr, Li = hermitian_cheb_stacks(edges, q, edge_weight, N, K=K)
    M_all = build_block_complex_stack(Lr, Li)                  # ((K+1)*2N, 2N)
    Xc = jnp.concatenate([real, imag], axis=0)                 # (2N, C_in)

    F = params["W1"].shape[2]
    label_dim = params["Wc"].shape[0]
    WcT = params["Wc"].T                                       # (2F, label_dim)

    vmem = pl.BlockSpec(memory_space=pltpu.MemorySpace.VMEM)   # whole array resident in VMEM
    out = pl.pallas_call(
        fused_chebnet_kernel,
        out_shape=jax.ShapeDtypeStruct((N, label_dim), jnp.float32),
        in_specs=[vmem] * 9,
        out_specs=vmem,
    )(M_all, Xc,
      params["W1"], params["b1"],
      params["W2"], params["b2"],
      WcT[:F], WcT[F:], params["bc"])
    return out


# ----------------------------------------------------------------------------
# Main
# ----------------------------------------------------------------------------
if __name__ == "__main__":
    # Small shapes consistent with the module: N nodes, in_c features, num_filter=2,
    # K=2, label_dim=2, 2 ChebConv layers, no activation/dropout.
    N, in_c, num_filter, K, label_dim = 16, 4, 2, 2, 2
    E = 32
    q = 0.25

    key = jax.random.PRNGKey(0)
    k_real, k_imag, k_edge, k_w, k_w1, k_w2, k_wc, k_bc = jax.random.split(key, 8)

    X_real = jax.random.normal(k_real, (N, in_c), dtype=jnp.float32)
    X_imag = jax.random.normal(k_imag, (N, in_c), dtype=jnp.float32)
    edges = jax.random.randint(k_edge, (2, E), 0, N, dtype=jnp.int32)
    edge_weight = jax.random.uniform(k_w, (E,), minval=0.5, maxval=1.5,
                                     dtype=jnp.float32)

    # Deterministic parameter init mirroring the torch module shapes/init scheme.
    stdv = 1.0 / math.sqrt(num_filter)
    params = {
        "W1": jax.random.uniform(k_w1, (K + 1, in_c, num_filter),
                                 minval=-stdv, maxval=stdv, dtype=jnp.float32),
        "b1": jnp.zeros((1, num_filter), jnp.float32),
        "W2": jax.random.uniform(k_w2, (K + 1, num_filter, num_filter),
                                 minval=-stdv, maxval=stdv, dtype=jnp.float32),
        "b2": jnp.zeros((1, num_filter), jnp.float32),
    }
    fan_in = num_filter * 2 * 1                      # Conv1d(in=2F, out=label_dim, k=1)
    bound = 1.0 / math.sqrt(fan_in)
    params["Wc"] = jax.random.uniform(k_wc, (label_dim, num_filter * 2),
                                      minval=-bound, maxval=bound, dtype=jnp.float32)
    params["bc"] = jax.random.uniform(k_bc, (1, label_dim),
                                      minval=-bound, maxval=bound, dtype=jnp.float32)

    fwd = jax.jit(chebnet_forward)
    out = fwd(X_real, X_imag, edges, q, edge_weight, params)
    jax.block_until_ready(out)
    assert out.shape == (N, label_dim)
    print("KERNEL_OK")
</pallas_src>

<mosaic_0001>
module attributes {stable_mosaic.version = 11 : i64} {
  func.func private @main(%arg0: i32) attributes {dimension_semantics = [#tpu.dimension_semantics<core_parallel>], iteration_bounds = array<i64: 2>, tpu.core_type = #tpu.core_type<sc_scalar_subcore>, window_params = []} {
    return
  }
}

module attributes {stable_mosaic.version = 11 : i64} {
  func.func private @main(%arg0: i32) attributes {dimension_semantics = [#tpu.dimension_semantics<core_parallel>], iteration_bounds = array<i64: 2>, tpu.core_type = #tpu.core_type<sc_scalar_subcore>, window_params = []} {
    return
  }
}

module attributes {stable_mosaic.version = 11 : i64} {
  func.func @fused_chebnet_kernel(%arg0: memref<96x32xf32, #tpu.memory_space<vmem>>, %arg1: memref<32x4xf32, #tpu.memory_space<vmem>>, %arg2: memref<3x4x2xf32, #tpu.memory_space<vmem>>, %arg3: memref<1x2xf32, #tpu.memory_space<vmem>>, %arg4: memref<3x2x2xf32, #tpu.memory_space<vmem>>, %arg5: memref<1x2xf32, #tpu.memory_space<vmem>>, %arg6: memref<2x2xf32, #tpu.memory_space<vmem>>, %arg7: memref<2x2xf32, #tpu.memory_space<vmem>>, %arg8: memref<1x2xf32, #tpu.memory_space<vmem>>, %arg9: memref<16x2xf32, #tpu.memory_space<vmem>>) attributes {dimension_semantics = [], scalar_prefetch = 0 : i64, scratch_operands = 0 : i64, tpu.core_type = #tpu.core_type<tc>} {
    %c0 = arith.constant 0 : index
    %c0_0 = arith.constant 0 : index
    %0 = vector.load %arg0[%c0, %c0_0] : memref<96x32xf32, #tpu.memory_space<vmem>>, vector<96x32xf32>
    %c0_1 = arith.constant 0 : index
    %c0_2 = arith.constant 0 : index
    %1 = vector.load %arg1[%c0_1, %c0_2] : memref<32x4xf32, #tpu.memory_space<vmem>>, vector<32x4xf32>
    %cst = arith.constant dense<0.000000e+00> : vector<96x4xf32>
    %2 = tpu.matmul %0, %1, %cst {dimension_numbers = #tpu.dot_dimension_numbers<[1], [0], [0], [1], [0, 0, 1, 1], [], []>} : vector<96x32xf32>, vector<32x4xf32>, vector<96x4xf32> -> vector<96x4xf32>
    %3 = vector.extract_strided_slice %2 {offsets = [0, 0], sizes = [32, 4], strides = [1, 1]} : vector<96x4xf32> to vector<32x4xf32>
    %c0_3 = arith.constant 0 : index
    %c0_4 = arith.constant 0 : index
    %c0_5 = arith.constant 0 : index
    %4 = vector.load %arg2[%c0_3, %c0_4, %c0_5] : memref<3x4x2xf32, #tpu.memory_space<vmem>>, vector<1x4x2xf32>
    %5 = vector.shape_cast %4 : vector<1x4x2xf32> to vector<4x2xf32>
    %cst_6 = arith.constant dense<0.000000e+00> : vector<32x2xf32>
    %6 = tpu.matmul %3, %5, %cst_6 {dimension_numbers = #tpu.dot_dimension_numbers<[1], [0], [0], [1], [0, 0, 1, 1], [], []>} : vector<32x4xf32>, vector<4x2xf32>, vector<32x2xf32> -> vector<32x2xf32>
    %7 = vector.extract_strided_slice %2 {offsets = [32, 0], sizes = [32, 4], strides = [1, 1]} : vector<96x4xf32> to vector<32x4xf32>
    %c1 = arith.constant 1 : index
    %c0_7 = arith.constant 0 : index
    %c0_8 = arith.constant 0 : index
    %8 = vector.load %arg2[%c1, %c0_7, %c0_8] : memref<3x4x2xf32, #tpu.memory_space<vmem>>, vector<1x4x2xf32>
    %9 = vector.shape_cast %8 : vector<1x4x2xf32> to vector<4x2xf32>
    %cst_9 = arith.constant dense<0.000000e+00> : vector<32x2xf32>
    %10 = tpu.matmul %7, %9, %cst_9 {dimension_numbers = #tpu.dot_dimension_numbers<[1], [0], [0], [1], [0, 0, 1, 1], [], []>} : vector<32x4xf32>, vector<4x2xf32>, vector<32x2xf32> -> vector<32x2xf32>
    %11 = arith.addf %6, %10 : vector<32x2xf32>
    %12 = vector.extract_strided_slice %2 {offsets = [64, 0], sizes = [32, 4], strides = [1, 1]} : vector<96x4xf32> to vector<32x4xf32>
    %c2 = arith.constant 2 : index
    %c0_10 = arith.constant 0 : index
    %c0_11 = arith.constant 0 : index
    %13 = vector.load %arg2[%c2, %c0_10, %c0_11] : memref<3x4x2xf32, #tpu.memory_space<vmem>>, vector<1x4x2xf32>
    %14 = vector.shape_cast %13 : vector<1x4x2xf32> to vector<4x2xf32>
    %cst_12 = arith.constant dense<0.000000e+00> : vector<32x2xf32>
    %15 = tpu.matmul %12, %14, %cst_12 {dimension_numbers = #tpu.dot_dimension_numbers<[1], [0], [0], [1], [0, 0, 1, 1], [], []>} : vector<32x4xf32>, vector<4x2xf32>, vector<32x2xf32> -> vector<32x2xf32>
    %16 = arith.addf %11, %15 : vector<32x2xf32>
    %c0_13 = arith.constant 0 : index
    %c0_14 = arith.constant 0 : index
    %17 = vector.load %arg3[%c0_13, %c0_14] : memref<1x2xf32, #tpu.memory_space<vmem>>, vector<1x2xf32>
    %18 = vector.broadcast %17 : vector<1x2xf32> to vector<32x2xf32>
    %19 = arith.addf %16, %18 : vector<32x2xf32>
    %cst_15 = arith.constant dense<0.000000e+00> : vector<96x2xf32>
    %20 = tpu.matmul %0, %19, %cst_15 {dimension_numbers = #tpu.dot_dimension_numbers<[1], [0], [0], [1], [0, 0, 1, 1], [], []>} : vector<96x32xf32>, vector<32x2xf32>, vector<96x2xf32> -> vector<96x2xf32>
    %21 = vector.extract_strided_slice %20 {offsets = [0, 0], sizes = [32, 2], strides = [1, 1]} : vector<96x2xf32> to vector<32x2xf32>
    %c0_16 = arith.constant 0 : index
    %c0_17 = arith.constant 0 : index
    %c0_18 = arith.constant 0 : index
    %22 = vector.load %arg4[%c0_16, %c0_17, %c0_18] : memref<3x2x2xf32, #tpu.memory_space<vmem>>, vector<1x2x2xf32>
    %23 = vector.shape_cast %22 : vector<1x2x2xf32> to vector<2x2xf32>
    %cst_19 = arith.constant dense<0.000000e+00> : vector<32x2xf32>
    %24 = tpu.matmul %21, %23, %cst_19 {dimension_numbers = #tpu.dot_dimension_numbers<[1], [0], [0], [1], [0, 0, 1, 1], [], []>} : vector<32x2xf32>, vector<2x2xf32>, vector<32x2xf32> -> vector<32x2xf32>
    %25 = vector.extract_strided_slice %20 {offsets = [32, 0], sizes = [32, 2], strides = [1, 1]} : vector<96x2xf32> to vector<32x2xf32>
    %c1_20 = arith.constant 1 : index
    %c0_21 = arith.constant 0 : index
    %c0_22 = arith.constant 0 : index
    %26 = vector.load %arg4[%c1_20, %c0_21, %c0_22] : memref<3x2x2xf32, #tpu.memory_space<vmem>>, vector<1x2x2xf32>
    %27 = vector.shape_cast %26 : vector<1x2x2xf32> to vector<2x2xf32>
    %cst_23 = arith.constant dense<0.000000e+00> : vector<32x2xf32>
    %28 = tpu.matmul %25, %27, %cst_23 {dimension_numbers = #tpu.dot_dimension_numbers<[1], [0], [0], [1], [0, 0, 1, 1], [], []>} : vector<32x2xf32>, vector<2x2xf32>, vector<32x2xf32> -> vector<32x2xf32>
    %29 = arith.addf %24, %28 : vector<32x2xf32>
    %30 = vector.extract_strided_slice %20 {offsets = [64, 0], sizes = [32, 2], strides = [1, 1]} : vector<96x2xf32> to vector<32x2xf32>
    %c2_24 = arith.constant 2 : index
    %c0_25 = arith.constant 0 : index
    %c0_26 = arith.constant 0 : index
    %31 = vector.load %arg4[%c2_24, %c0_25, %c0_26] : memref<3x2x2xf32, #tpu.memory_space<vmem>>, vector<1x2x2xf32>
    %32 = vector.shape_cast %31 : vector<1x2x2xf32> to vector<2x2xf32>
    %cst_27 = arith.constant dense<0.000000e+00> : vector<32x2xf32>
    %33 = tpu.matmul %30, %32, %cst_27 {dimension_numbers = #tpu.dot_dimension_numbers<[1], [0], [0], [1], [0, 0, 1, 1], [], []>} : vector<32x2xf32>, vector<2x2xf32>, vector<32x2xf32> -> vector<32x2xf32>
    %34 = arith.addf %29, %33 : vector<32x2xf32>
    %c0_28 = arith.constant 0 : index
    %c0_29 = arith.constant 0 : index
    %35 = vector.load %arg5[%c0_28, %c0_29] : memref<1x2xf32, #tpu.memory_space<vmem>>, vector<1x2xf32>
    %36 = vector.broadcast %35 : vector<1x2xf32> to vector<32x2xf32>
    %37 = arith.addf %34, %36 : vector<32x2xf32>
    %38 = vector.extract_strided_slice %37 {offsets = [0, 0], sizes = [16, 2], strides = [1, 1]} : vector<32x2xf32> to vector<16x2xf32>
    %39 = vector.extract_strided_slice %37 {offsets = [16, 0], sizes = [16, 2], strides = [1, 1]} : vector<32x2xf32> to vector<16x2xf32>
    %c0_30 = arith.constant 0 : index
    %c0_31 = arith.constant 0 : index
    %40 = vector.load %arg6[%c0_30, %c0_31] : memref<2x2xf32, #tpu.memory_space<vmem>>, vector<2x2xf32>
    %cst_32 = arith.constant dense<0.000000e+00> : vector<16x2xf32>
    %41 = tpu.matmul %38, %40, %cst_32 {dimension_numbers = #tpu.dot_dimension_numbers<[1], [0], [0], [1], [0, 0, 1, 1], [], []>} : vector<16x2xf32>, vector<2x2xf32>, vector<16x2xf32> -> vector<16x2xf32>
    %c0_33 = arith.constant 0 : index
    %c0_34 = arith.constant 0 : index
    %42 = vector.load %arg7[%c0_33, %c0_34] : memref<2x2xf32, #tpu.memory_space<vmem>>, vector<2x2xf32>
    %cst_35 = arith.constant dense<0.000000e+00> : vector<16x2xf32>
    %43 = tpu.matmul %39, %42, %cst_35 {dimension_numbers = #tpu.dot_dimension_numbers<[1], [0], [0], [1], [0, 0, 1, 1], [], []>} : vector<16x2xf32>, vector<2x2xf32>, vector<16x2xf32> -> vector<16x2xf32>
    %44 = arith.addf %41, %43 : vector<16x2xf32>
    %c0_36 = arith.constant 0 : index
    %c0_37 = arith.constant 0 : index
    %45 = vector.load %arg8[%c0_36, %c0_37] : memref<1x2xf32, #tpu.memory_space<vmem>>, vector<1x2xf32>
    %46 = vector.broadcast %45 : vector<1x2xf32> to vector<16x2xf32>
    %47 = arith.addf %44, %46 : vector<16x2xf32>
    %cst_38 = arith.constant dense<0xFF800000> : vector<16xf32>
    %48 = vector.multi_reduction <maximumf>, %47, %cst_38 [1] : vector<16x2xf32> to vector<16xf32>
    %49 = vector.shape_cast %48 : vector<16xf32> to vector<16x1xf32>
    %50 = vector.broadcast %49 : vector<16x1xf32> to vector<16x2xf32>
    %51 = arith.subf %47, %50 : vector<16x2xf32>
    %52 = math.exp %51 : vector<16x2xf32>
    %cst_39 = arith.constant dense<0.000000e+00> : vector<16xf32>
    %53 = vector.multi_reduction <add>, %52, %cst_39 [1] : vector<16x2xf32> to vector<16xf32>
    %54 = vector.shape_cast %53 : vector<16xf32> to vector<16x1xf32>
    %55 = math.log %54 : vector<16x1xf32>
    %56 = vector.broadcast %55 : vector<16x1xf32> to vector<16x2xf32>
    %57 = arith.subf %51, %56 : vector<16x2xf32>
    %c0_40 = arith.constant 0 : index
    %c0_41 = arith.constant 0 : index
    %58 = vector.load %arg9[%c0_40, %c0_41] : memref<16x2xf32, #tpu.memory_space<vmem>>, vector<16x2xf32>
    tpu.vector_store %arg9[%c0_40, %c0_41], %57 {strides = array<i32>} : memref<16x2xf32, #tpu.memory_space<vmem>>, vector<16x2xf32>,
    return
  }
}

</mosaic_0001>

<llo_original>
// kernel: chebnet_forward.1
$region0: #{chebnet_forward.1}
  #allocation0 [shape = 'u32[]', space=smem, size = 0x4, offset = 0x4, fixed_abs, tag = 'smem constant byte address 0x4 - core index']
  #allocation1 [shape = 'u32[144,128]{1,0:T(1,128)}', space=vmem, size = 0x12000, scoped, tag = 'internal scratch']
  %s0 = inlined_call_operand.vmem [shape: f32[96,32], index: 0, kind: input, shape index: {}]
  %s1 = inlined_call_operand.vmem [shape: f32[32,4], index: 1, kind: input, shape index: {}]
  %s2 = inlined_call_operand.vmem [shape: f32[3,4,2], index: 2, kind: input, shape index: {}]
  %s3 = inlined_call_operand.vmem [shape: f32[1,2], index: 3, kind: input, shape index: {}]
  %s4 = inlined_call_operand.vmem [shape: f32[3,2,2], index: 4, kind: input, shape index: {}]
  %s5 = inlined_call_operand.vmem [shape: f32[1,2], index: 5, kind: input, shape index: {}]
  %s6 = inlined_call_operand.vmem [shape: f32[2,2], index: 6, kind: input, shape index: {}]
  %s7 = inlined_call_operand.vmem [shape: f32[2,2], index: 7, kind: input, shape index: {}]
  %s8 = inlined_call_operand.vmem [shape: f32[1,2], index: 8, kind: input, shape index: {}]
  %s9 = inlined_call_operand.vmem [shape: f32[16,2], index: 9, kind: output, shape index: {}]
  %s10 = sld [smem:[#allocation0]]
  $region46: #{chebnet_forward.1} parent=0
    _
  %s12 = ssub.s32 1, %s10
  %s13 = scalar_select 0, %s12, %s10
  // Predicated region
  $region2: #{chebnet_forward.1} parent=0 // pred_check
    _
  $region3: #{chebnet_forward.1} parent=0 // pred_check_branch
    %15 = sbr.rel (0) target = $region5
  $region4: #{chebnet_forward.1} parent=0 // pred_region
    _
  $region5: #{chebnet_forward.1} parent=0 // pred_fallthru
    _
  // Predicated region
  $region6: #{chebnet_forward.1} parent=0 // pred_check
    _
  $region7: #{chebnet_forward.1} parent=0 // pred_check_branch
    %17 = sbr.rel (0) target = $region9
  $region8: #{chebnet_forward.1} parent=0 // pred_region
    _
  $region9: #{chebnet_forward.1} parent=0 // pred_fallthru
    _
  // Predicated region
  $region10: #{chebnet_forward.1} parent=0 // pred_check
    _
  $region11: #{chebnet_forward.1} parent=0 // pred_check_branch
    %19 = sbr.rel (0) target = $region13
  $region12: #{chebnet_forward.1} parent=0 // pred_region
    _
  $region13: #{chebnet_forward.1} parent=0 // pred_fallthru
    _
  // Predicated region
  $region14: #{chebnet_forward.1} parent=0 // pred_check
    _
  $region15: #{chebnet_forward.1} parent=0 // pred_check_branch
    %21 = sbr.rel (0) target = $region17
  $region16: #{chebnet_forward.1} parent=0 // pred_region
    _
  $region17: #{chebnet_forward.1} parent=0 // pred_fallthru
    _
  // Predicated region
  $region18: #{chebnet_forward.1} parent=0 // pred_check
    _
  $region19: #{chebnet_forward.1} parent=0 // pred_check_branch
    %23 = sbr.rel (0) target = $region21
  $region20: #{chebnet_forward.1} parent=0 // pred_region
    _
  $region21: #{chebnet_forward.1} parent=0 // pred_fallthru
    _
  // Predicated region
  $region22: #{chebnet_forward.1} parent=0 // pred_check
    _
  $region23: #{chebnet_forward.1} parent=0 // pred_check_branch
    %25 = sbr.rel (0) target = $region25
  $region24: #{chebnet_forward.1} parent=0 // pred_region
    _
  $region25: #{chebnet_forward.1} parent=0 // pred_fallthru
    _
  // Predicated region
  $region26: #{chebnet_forward.1} parent=0 // pred_check
    _
  $region27: #{chebnet_forward.1} parent=0 // pred_check_branch
    %27 = sbr.rel (0) target = $region29
  $region28: #{chebnet_forward.1} parent=0 // pred_region
    _
  $region29: #{chebnet_forward.1} parent=0 // pred_fallthru
    _
  // Predicated region
  $region30: #{chebnet_forward.1} parent=0 // pred_check
    _
  $region31: #{chebnet_forward.1} parent=0 // pred_check_branch
    %29 = sbr.rel (0) target = $region33
  $region32: #{chebnet_forward.1} parent=0 // pred_region
    _
  $region33: #{chebnet_forward.1} parent=0 // pred_fallthru
    _
  // Predicated region
  $region34: #{chebnet_forward.1} parent=0 // pred_check
    _
  $region35: #{chebnet_forward.1} parent=0 // pred_check_branch
    %31 = sbr.rel (0) target = $region37
  $region36: #{chebnet_forward.1} parent=0 // pred_region
    _
  $region37: #{chebnet_forward.1} parent=0 // pred_fallthru
    _
  %v32 = vld [vmem:[%s0] sm:$0xff]
  %v33 = vld [vmem:[%s0 + $0x8] sm:$0xff]
  %v34 = vld [vmem:[%s0 + $0x10] sm:$0xff]
  %v35 = vld [vmem:[%s0 + $0x18] sm:$0xff]
  %v36 = vld [vmem:[%s0 + $0x20] sm:$0xff]
  %v37 = vld [vmem:[%s0 + $0x28] sm:$0xff]
  %v38 = vld [vmem:[%s0 + $0x30] sm:$0xff]
  %v39 = vld [vmem:[%s0 + $0x38] sm:$0xff]
  %v40 = vld [vmem:[%s0 + $0x40] sm:$0xff]
  %v41 = vld [vmem:[%s0 + $0x48] sm:$0xff]
  %v42 = vld [vmem:[%s0 + $0x50] sm:$0xff]
  %v43 = vld [vmem:[%s0 + $0x58] sm:$0xff]
  %v44 = vld [vmem:[%s1] sm:$0xff]
  %v45 = vld [vmem:[%s1 + $0x8] sm:$0xff]
  %v46 = vld [vmem:[%s1 + $0x10] sm:$0xff]
  %v47 = vld [vmem:[%s1 + $0x18] sm:$0xff]
  %vm48 = vcmask 261120
  %v50 = vsel %vm48, %v32, 0
  %v53 = vsel %vm48, %v33, 0
  %v56 = vsel %vm48, %v34, 0
  %v59 = vsel %vm48, %v35, 0
  %v62 = vsel %vm48, %v36, 0
  %v65 = vsel %vm48, %v37, 0
  %v68 = vsel %vm48, %v38, 0
  %v71 = vsel %vm48, %v39, 0
  %v74 = vsel %vm48, %v40, 0
  %v77 = vsel %vm48, %v41, 0
  %v80 = vsel %vm48, %v42, 0
  %v83 = vsel %vm48, %v43, 0
  %85 = vmatprep.subr.mxu0 0.0
  %86 = vmatpush1.msra.mxu0 %v44
  %87 = vmatprep.subr.mxu0 0.0
  %88 = vmatpush1.msra.mxu0 %v45
  %89 = vmatprep.subr.mxu0 0.0
  %90 = vmatpush1.msra.mxu0 %v46
  %91 = vmatprep.subr.mxu0 0.0
  %92 = vmatpush1.msra.mxu0 %v47
  %93 = vmatprep.subr.mxu0 0.0
  %94 = vmatpush1.msra.mxu0 0.0
  %95 = vmatprep.subr.mxu0 0.0
  %96 = vmatpush1.msra.mxu0 0.0
  %97 = vmatprep.subr.mxu0 0.0
  %98 = vmatpush1.msra.mxu0 0.0
  %99 = vmatprep.subr.mxu0 0.0
  %100 = vmatpush1.msra.mxu0 0.0
  %101 = vmatprep.subr.mxu0 0.0
  %102 = vmatpush1.msra.mxu0 0.0
  %103 = vmatprep.subr.mxu0 0.0
  %104 = vmatpush1.msra.mxu0 0.0
  %105 = vmatprep.subr.mxu0 0.0
  %106 = vmatpush1.msra.mxu0 0.0
  %107 = vmatprep.subr.mxu0 0.0
  %108 = vmatpush1.msra.mxu0 0.0
  %109 = vmatprep.subr.mxu0 0.0
  %110 = vmatpush1.msra.mxu0 0.0
  %111 = vmatprep.subr.mxu0 0.0
  %112 = vmatpush1.msra.mxu0 0.0
  %113 = vmatprep.subr.mxu0 0.0
  %114 = vmatpush1.msra.mxu0 0.0
  %115 = vmatprep.subr.mxu0 0.0
  %116 = vmatpush1.msra.mxu0 0.0
  %117 = vmatprep.subr.mxu0 0.0
  %118 = vmatpush1.msra.mxu0 0.0
  %119 = vmatprep.subr.mxu0 0.0
  %120 = vmatpush1.msra.mxu0 0.0
  %121 = vmatprep.subr.mxu0 0.0
  %122 = vmatpush1.msra.mxu0 0.0
  %123 = vmatprep.subr.mxu0 0.0
  %124 = vmatpush1.msra.mxu0 0.0
  %125 = vmatprep.subr.mxu0 0.0
  %126 = vmatpush1.msra.mxu0 0.0
  %127 = vmatprep.subr.mxu0 0.0
  %128 = vmatpush1.msra.mxu0 0.0
  %129 = vmatprep.subr.mxu0 0.0
  %130 = vmatpush1.msra.mxu0 0.0
  %131 = vmatprep.subr.mxu0 0.0
  %132 = vmatpush1.msra.mxu0 0.0
  %133 = vmatprep.subr.mxu0 0.0
  %134 = vmatpush1.msra.mxu0 0.0
  %135 = vmatprep.subr.mxu0 0.0
  %136 = vmatpush1.msra.mxu0 0.0
  %137 = vmatprep.subr.mxu0 0.0
  %138 = vmatpush1.msra.mxu0 0.0
  %139 = vmatprep.subr.mxu0 0.0
  %140 = vmatpush1.msra.mxu0 0.0
  %141 = vmatprep.subr.mxu0 0.0
  %142 = vmatpush1.msra.mxu0 0.0
  %143 = vmatprep.subr.mxu0 0.0
  %144 = vmatpush1.msra.mxu0 0.0
  %145 = vmatprep.subr.mxu0 0.0
  %146 = vmatpush1.msra.mxu0 0.0
  %147 = vmatprep.subr.mxu0 0.0
  %148 = vmatpush1.msra.mxu0 0.0
  %149 = vmatprep.mubr.f32.mxu0 0.0
  %150 = vmatmul.mubr.f32.gmra.mrb[0].mxu0 %v50
  %v151 = vpop.f32.mrb[0].mxu0
  %v152 = vadd.f32 0.0, %v151
  %v153 = vpop.f32.mrb[0].mxu0
  %154 = vmatprep.mubr.f32.mxu0 0.0
  %155 = vmatmul.mubr.f32.gmra.mrb[0].mxu0 %v53
  %v156 = vpop.f32.mrb[0].mxu0
  %v157 = vadd.f32 0.0, %v156
  %v158 = vpop.f32.mrb[0].mxu0
  %159 = vmatprep.mubr.f32.mxu0 0.0
  %160 = vmatmul.mubr.f32.gmra.mrb[0].mxu0 %v56
  %v161 = vpop.f32.mrb[0].mxu0
  %v162 = vadd.f32 0.0, %v161
  %v163 = vpop.f32.mrb[0].mxu0
  %164 = vmatprep.mubr.f32.mxu0 0.0
  %165 = vmatmul.mubr.f32.gmra.mrb[0].mxu0 %v59
  %v166 = vpop.f32.mrb[0].mxu0
  %v167 = vadd.f32 0.0, %v166
  %v168 = vpop.f32.mrb[0].mxu0
  %169 = vmatprep.mubr.f32.mxu0 0.0
  %170 = vmatmul.mubr.f32.gmra.mrb[0].mxu0 %v62
  %v171 = vpop.f32.mrb[0].mxu0
  %v172 = vadd.f32 0.0, %v171
  %v173 = vpop.f32.mrb[0].mxu0
  %174 = vmatprep.mubr.f32.mxu0 0.0
  %175 = vmatmul.mubr.f32.gmra.mrb[0].mxu0 %v65
  %v176 = vpop.f32.mrb[0].mxu0
  %v177 = vadd.f32 0.0, %v176
  %v178 = vpop.f32.mrb[0].mxu0
  %179 = vmatprep.mubr.f32.mxu0 0.0
  %180 = vmatmul.mubr.f32.gmra.mrb[0].mxu0 %v68
  %v181 = vpop.f32.mrb[0].mxu0
  %v182 = vadd.f32 0.0, %v181
  %v183 = vpop.f32.mrb[0].mxu0
  %184 = vmatprep.mubr.f32.mxu0 0.0
  %185 = vmatmul.mubr.f32.gmra.mrb[0].mxu0 %v71
  %v186 = vpop.f32.mrb[0].mxu0
  %v187 = vadd.f32 0.0, %v186
  %v188 = vpop.f32.mrb[0].mxu0
  %189 = vmatprep.mubr.f32.mxu0 0.0
  %190 = vmatmul.mubr.f32.gmra.mrb[0].mxu0 %v74
  %v191 = vpop.f32.mrb[0].mxu0
  %v192 = vadd.f32 0.0, %v191
  %v193 = vpop.f32.mrb[0].mxu0
  %194 = vmatprep.mubr.f32.mxu0 0.0
  %195 = vmatmul.mubr.f32.gmra.mrb[0].mxu0 %v77
  %v196 = vpop.f32.mrb[0].mxu0
  %v197 = vadd.f32 0.0, %v196
  %v198 = vpop.f32.mrb[0].mxu0
  %199 = vmatprep.mubr.f32.mxu0 0.0
  %200 = vmatmul.mubr.f32.gmra.mrb[0].mxu0 %v80
  %v201 = vpop.f32.mrb[0].mxu0
  %v202 = vadd.f32 0.0, %v201
  %v203 = vpop.f32.mrb[0].mxu0
  %204 = vmatprep.mubr.f32.mxu0 0.0
  %205 = vmatmul.mubr.f32.gmra.mrb[0].mxu0 %v83
  %v206 = vpop.f32.mrb[0].mxu0
  %v207 = vadd.f32 0.0, %v206
  %v208 = vpop.f32.mrb[0].mxu0
  %209 = vdwg.mxu0
  %v210 = vld [vmem:[%s2] sm:$0xf]
  %s211 = scalar_lea.vmem %s2, 4
  %v212 = vld [vmem:[%s211] sm:$0xf]
  %vm213 = vcmask 31744
  %v215 = vsel %vm213, %v172, 0
  %v218 = vsel %vm213, %v177, 0
  %v221 = vsel %vm213, %v182, 0
  %v224 = vsel %vm213, %v187, 0
  %vm226 = vcmask 1043456
  %v228 = vsel %vm226, %v212, 0
  %230 = vmatprep.subr.mxu0 0.0
  %231 = vmatpush1.msra.mxu0 %v228
  %232 = vmatprep.subr.mxu0 0.0
  %233 = vmatpush1.msra.mxu0 0.0
  %234 = vmatprep.subr.mxu0 0.0
  %235 = vmatpush1.msra.mxu0 0.0
  %236 = vmatprep.subr.mxu0 0.0
  %237 = vmatpush1.msra.mxu0 0.0
  %238 = vmatprep.subr.mxu0 0.0
  %239 = vmatpush1.msra.mxu0 0.0
  %240 = vmatprep.subr.mxu0 0.0
  %241 = vmatpush1.msra.mxu0 0.0
  %242 = vmatprep.subr.mxu0 0.0
  %243 = vmatpush1.msra.mxu0 0.0
  %244 = vmatprep.subr.mxu0 0.0
  %245 = vmatpush1.msra.mxu0 0.0
  %246 = vmatprep.subr.mxu0 0.0
  %247 = vmatpush1.msra.mxu0 0.0
  %248 = vmatprep.subr.mxu0 0.0
  %249 = vmatpush1.msra.mxu0 0.0
  %250 = vmatprep.subr.mxu0 0.0
  %251 = vmatpush1.msra.mxu0 0.0
  %252 = vmatprep.subr.mxu0 0.0
  %253 = vmatpush1.msra.mxu0 0.0
  %254 = vmatprep.subr.mxu0 0.0
  %255 = vmatpush1.msra.mxu0 0.0
  %256 = vmatprep.subr.mxu0 0.0
  %257 = vmatpush1.msra.mxu0 0.0
  %258 = vmatprep.subr.mxu0 0.0
  %259 = vmatpush1.msra.mxu0 0.0
  %260 = vmatprep.subr.mxu0 0.0
  %261 = vmatpush1.msra.mxu0 0.0
  %262 = vmatprep.subr.mxu0 0.0
  %263 = vmatpush1.msra.mxu0 0.0
  %264 = vmatprep.subr.mxu0 0.0
  %265 = vmatpush1.msra.mxu0 0.0
  %266 = vmatprep.subr.mxu0 0.0
  %267 = vmatpush1.msra.mxu0 0.0
  %268 = vmatprep.subr.mxu0 0.0
  %269 = vmatpush1.msra.mxu0 0.0
  %270 = vmatprep.subr.mxu0 0.0
  %271 = vmatpush1.msra.mxu0 0.0
  %272 = vmatprep.subr.mxu0 0.0
  %273 = vmatpush1.msra.mxu0 0.0
  %274 = vmatprep.subr.mxu0 0.0
  %275 = vmatpush1.msra.mxu0 0.0
  %276 = vmatprep.subr.mxu0 0.0
  %277 = vmatpush1.msra.mxu0 0.0
  %278 = vmatprep.subr.mxu0 0.0
  %279 = vmatpush1.msra.mxu0 0.0
  %280 = vmatprep.subr.mxu0 0.0
  %281 = vmatpush1.msra.mxu0 0.0
  %282 = vmatprep.subr.mxu0 0.0
  %283 = vmatpush1.msra.mxu0 0.0
  %284 = vmatprep.subr.mxu0 0.0
  %285 = vmatpush1.msra.mxu0 0.0
  %286 = vmatprep.subr.mxu0 0.0
  %287 = vmatpush1.msra.mxu0 0.0
  %288 = vmatprep.subr.mxu0 0.0
  %289 = vmatpush1.msra.mxu0 0.0
  %290 = vmatprep.subr.mxu0 0.0
  %291 = vmatpush1.msra.mxu0 0.0
  %292 = vmatprep.subr.mxu0 0.0
  %293 = vmatpush1.msra.mxu0 0.0
  %294 = vmatprep.mubr.f32.mxu0 0.0
  %295 = vmatmul.mubr.f32.gmra.mrb[0].mxu0 %v215
  %v296 = vpop.f32.mrb[0].mxu0
  %v297 = vadd.f32 0.0, %v296
  %v298 = vpop.f32.mrb[0].mxu0
  %299 = vmatprep.mubr.f32.mxu0 0.0
  %300 = vmatmul.mubr.f32.gmra.mrb[0].mxu0 %v218
  %v301 = vpop.f32.mrb[0].mxu0
  %v302 = vadd.f32 0.0, %v301
  %v303 = vpop.f32.mrb[0].mxu0
  %304 = vmatprep.mubr.f32.mxu0 0.0
  %305 = vmatmul.mubr.f32.gmra.mrb[0].mxu0 %v221
  %v306 = vpop.f32.mrb[0].mxu0
  %v307 = vadd.f32 0.0, %v306
  %v308 = vpop.f32.mrb[0].mxu0
  %309 = vmatprep.mubr.f32.mxu0 0.0
  %310 = vmatmul.mubr.f32.gmra.mrb[0].mxu0 %v224
  %v311 = vpop.f32.mrb[0].mxu0
  %v312 = vadd.f32 0.0, %v311
  %v313 = vpop.f32.mrb[0].mxu0
  %314 = vdwg.mxu0
  %v316 = vsel %vm213, %v152, 0
  %v319 = vsel %vm213, %v157, 0
  %v322 = vsel %vm213, %v162, 0
  %v325 = vsel %vm213, %v167, 0
  %v328 = vsel %vm226, %v210, 0
  %330 = vmatprep.subr.mxu0 0.0
  %331 = vmatpush1.msra.mxu0 %v328
  %332 = vmatprep.subr.mxu0 0.0
  %333 = vmatpush1.msra.mxu0 0.0
  %334 = vmatprep.subr.mxu0 0.0
  %335 = vmatpush1.msra.mxu0 0.0
  %336 = vmatprep.subr.mxu0 0.0
  %337 = vmatpush1.msra.mxu0 0.0
  %338 = vmatprep.subr.mxu0 0.0
  %339 = vmatpush1.msra.mxu0 0.0
  %340 = vmatprep.subr.mxu0 0.0
  %341 = vmatpush1.msra.mxu0 0.0
  %342 = vmatprep.subr.mxu0 0.0
  %343 = vmatpush1.msra.mxu0 0.0
  %344 = vmatprep.subr.mxu0 0.0
  %345 = vmatpush1.msra.mxu0 0.0
  %346 = vmatprep.subr.mxu0 0.0
  %347 = vmatpush1.msra.mxu0 0.0
  %348 = vmatprep.subr.mxu0 0.0
  %349 = vmatpush1.msra.mxu0 0.0
  %350 = vmatprep.subr.mxu0 0.0
  %351 = vmatpush1.msra.mxu0 0.0
  %352 = vmatprep.subr.mxu0 0.0
  %353 = vmatpush1.msra.mxu0 0.0
  %354 = vmatprep.subr.mxu0 0.0
  %355 = vmatpush1.msra.mxu0 0.0
  %356 = vmatprep.subr.mxu0 0.0
  %357 = vmatpush1.msra.mxu0 0.0
  %358 = vmatprep.subr.mxu0 0.0
  %359 = vmatpush1.msra.mxu0 0.0
  %360 = vmatprep.subr.mxu0 0.0
  %361 = vmatpush1.msra.mxu0 0.0
  %362 = vmatprep.subr.mxu0 0.0
  %363 = vmatpush1.msra.mxu0 0.0
  %364 = vmatprep.subr.mxu0 0.0
  %365 = vmatpush1.msra.mxu0 0.0
  %366 = vmatprep.subr.mxu0 0.0
  %367 = vmatpush1.msra.mxu0 0.0
  %368 = vmatprep.subr.mxu0 0.0
  %369 = vmatpush1.msra.mxu0 0.0
  %370 = vmatprep.subr.mxu0 0.0
  %371 = vmatpush1.msra.mxu0 0.0
  %372 = vmatprep.subr.mxu0 0.0
  %373 = vmatpush1.msra.mxu0 0.0
  %374 = vmatprep.subr.mxu0 0.0
  %375 = vmatpush1.msra.mxu0 0.0
  %376 = vmatprep.subr.mxu0 0.0
  %377 = vmatpush1.msra.mxu0 0.0
  %378 = vmatprep.subr.mxu0 0.0
  %379 = vmatpush1.msra.mxu0 0.0
  %380 = vmatprep.subr.mxu0 0.0
  %381 = vmatpush1.msra.mxu0 0.0
  %382 = vmatprep.subr.mxu0 0.0
  %383 = vmatpush1.msra.mxu0 0.0
  %384 = vmatprep.subr.mxu0 0.0
  %385 = vmatpush1.msra.mxu0 0.0
  %386 = vmatprep.subr.mxu0 0.0
  %387 = vmatpush1.msra.mxu0 0.0
  %388 = vmatprep.subr.mxu0 0.0
  %389 = vmatpush1.msra.mxu0 0.0
  %390 = vmatprep.subr.mxu0 0.0
  %391 = vmatpush1.msra.mxu0 0.0
  %392 = vmatprep.subr.mxu0 0.0
  %393 = vmatpush1.msra.mxu0 0.0
  %394 = vmatprep.mubr.f32.mxu0 0.0
  %395 = vmatmul.mubr.f32.gmra.mrb[0].mxu0 %v316
  %v396 = vpop.f32.mrb[0].mxu0
  %v397 = vadd.f32 %v297, %v396
  %v398 = vpop.f32.mrb[0].mxu0
  %399 = vmatprep.mubr.f32.mxu0 0.0
  %400 = vmatmul.mubr.f32.gmra.mrb[0].mxu0 %v319
  %v401 = vpop.f32.mrb[0].mxu0
  %v402 = vadd.f32 %v302, %v401
  %v403 = vpop.f32.mrb[0].mxu0
  %404 = vmatprep.mubr.f32.mxu0 0.0
  %405 = vmatmul.mubr.f32.gmra.mrb[0].mxu0 %v322
  %v406 = vpop.f32.mrb[0].mxu0
  %v407 = vadd.f32 %v307, %v406
  %v408 = vpop.f32.mrb[0].mxu0
  %409 = vmatprep.mubr.f32.mxu0 0.0
  %410 = vmatmul.mubr.f32.gmra.mrb[0].mxu0 %v325
  %v411 = vpop.f32.mrb[0].mxu0
  %v412 = vadd.f32 %v312, %v411
  %v413 = vpop.f32.mrb[0].mxu0
  %414 = vdwg.mxu0
  %s415 = scalar_lea.vmem %s2, 8
  %v416 = vld [vmem:[%s415] sm:$0xf]
  %v418 = vsel %vm213, %v192, 0
  %v421 = vsel %vm213, %v197, 0
  %v424 = vsel %vm213, %v202, 0
  %v427 = vsel %vm213, %v207, 0
  %v430 = vsel %vm226, %v416, 0
  %432 = vmatprep.subr.mxu0 0.0
  %433 = vmatpush1.msra.mxu0 %v430
  %434 = vmatprep.subr.mxu0 0.0
  %435 = vmatpush1.msra.mxu0 0.0
  %436 = vmatprep.subr.mxu0 0.0
  %437 = vmatpush1.msra.mxu0 0.0
  %438 = vmatprep.subr.mxu0 0.0
  %439 = vmatpush1.msra.mxu0 0.0
  %440 = vmatprep.subr.mxu0 0.0
  %441 = vmatpush1.msra.mxu0 0.0
  %442 = vmatprep.subr.mxu0 0.0
  %443 = vmatpush1.msra.mxu0 0.0
  %444 = vmatprep.subr.mxu0 0.0
  %445 = vmatpush1.msra.mxu0 0.0
  %446 = vmatprep.subr.mxu0 0.0
  %447 = vmatpush1.msra.mxu0 0.0
  %448 = vmatprep.subr.mxu0 0.0
  %449 = vmatpush1.msra.mxu0 0.0
  %450 = vmatprep.subr.mxu0 0.0
  %451 = vmatpush1.msra.mxu0 0.0
  %452 = vmatprep.subr.mxu0 0.0
  %453 = vmatpush1.msra.mxu0 0.0
  %454 = vmatprep.subr.mxu0 0.0
  %455 = vmatpush1.msra.mxu0 0.0
  %456 = vmatprep.subr.mxu0 0.0
  %457 = vmatpush1.msra.mxu0 0.0
  %458 = vmatprep.subr.mxu0 0.0
  %459 = vmatpush1.msra.mxu0 0.0
  %460 = vmatprep.subr.mxu0 0.0
  %461 = vmatpush1.msra.mxu0 0.0
  %462 = vmatprep.subr.mxu0 0.0
  %463 = vmatpush1.msra.mxu0 0.0
  %464 = vmatprep.subr.mxu0 0.0
  %465 = vmatpush1.msra.mxu0 0.0
  %466 = vmatprep.subr.mxu0 0.0
  %467 = vmatpush1.msra.mxu0 0.0
  %468 = vmatprep.subr.mxu0 0.0
  %469 = vmatpush1.msra.mxu0 0.0
  %470 = vmatprep.subr.mxu0 0.0
  %471 = vmatpush1.msra.mxu0 0.0
  %472 = vmatprep.subr.mxu0 0.0
  %473 = vmatpush1.msra.mxu0 0.0
  %474 = vmatprep.subr.mxu0 0.0
  %475 = vmatpush1.msra.mxu0 0.0
  %476 = vmatprep.subr.mxu0 0.0
  %477 = vmatpush1.msra.mxu0 0.0
  %478 = vmatprep.subr.mxu0 0.0
  %479 = vmatpush1.msra.mxu0 0.0
  %480 = vmatprep.subr.mxu0 0.0
  %481 = vmatpush1.msra.mxu0 0.0
  %482 = vmatprep.subr.mxu0 0.0
  %483 = vmatpush1.msra.mxu0 0.0
  %484 = vmatprep.subr.mxu0 0.0
  %485 = vmatpush1.msra.mxu0 0.0
  %486 = vmatprep.subr.mxu0 0.0
  %487 = vmatpush1.msra.mxu0 0.0
  %488 = vmatprep.subr.mxu0 0.0
  %489 = vmatpush1.msra.mxu0 0.0
  %490 = vmatprep.subr.mxu0 0.0
  %491 = vmatpush1.msra.mxu0 0.0
  %492 = vmatprep.subr.mxu0 0.0
  %493 = vmatpush1.msra.mxu0 0.0
  %494 = vmatprep.subr.mxu0 0.0
  %495 = vmatpush1.msra.mxu0 0.0
  %496 = vmatprep.mubr.f32.mxu0 0.0
  %497 = vmatmul.mubr.f32.gmra.mrb[0].mxu0 %v418
  %v498 = vpop.f32.mrb[0].mxu0
  %v499 = vadd.f32 0.0, %v498
  %v500 = vpop.f32.mrb[0].mxu0
  %501 = vmatprep.mubr.f32.mxu0 0.0
  %502 = vmatmul.mubr.f32.gmra.mrb[0].mxu0 %v421
  %v503 = vpop.f32.mrb[0].mxu0
  %v504 = vadd.f32 0.0, %v503
  %v505 = vpop.f32.mrb[0].mxu0
  %506 = vmatprep.mubr.f32.mxu0 0.0
  %507 = vmatmul.mubr.f32.gmra.mrb[0].mxu0 %v424
  %v508 = vpop.f32.mrb[0].mxu0
  %v509 = vadd.f32 0.0, %v508
  %v510 = vpop.f32.mrb[0].mxu0
  %511 = vmatprep.mubr.f32.mxu0 0.0
  %512 = vmatmul.mubr.f32.gmra.mrb[0].mxu0 %v427
  %v513 = vpop.f32.mrb[0].mxu0
  %v514 = vadd.f32 0.0, %v513
  %v515 = vpop.f32.mrb[0].mxu0
  %516 = vdwg.mxu0
  %v517 = vadd.f32 %v397, %v499
  %v518 = vadd.f32 %v402, %v504
  %v519 = vadd.f32 %v407, %v509
  %v520 = vadd.f32 %v412, %v514
  %v521 = vld [vmem:[%s3] sm:$0x1]
  %v523 = vlaneseq
  %v524 = vshrl.u32 %v523, 7
  %v525 = vsub.s32 0, %v524
  %v526 = vrot.slane %v521, %v525
  %v528 = vadd.f32 %v517, %v526
  %v529 = vadd.f32 %v518, %v526
  %v530 = vadd.f32 %v519, %v526
  %v531 = vadd.f32 %v520, %v526
  %532 = vmatprep.subr.mxu0 0.0
  %533 = vmatpush1.msra.mxu0 %v528
  %534 = vmatprep.subr.mxu0 0.0
  %535 = vmatpush1.msra.mxu0 %v529
  %536 = vmatprep.subr.mxu0 0.0
  %537 = vmatpush1.msra.mxu0 %v530
  %538 = vmatprep.subr.mxu0 0.0
  %539 = vmatpush1.msra.mxu0 %v531
  %540 = vmatprep.subr.mxu0 0.0
  %541 = vmatpush1.msra.mxu0 0.0
  %542 = vmatprep.subr.mxu0 0.0
  %543 = vmatpush1.msra.mxu0 0.0
  %544 = vmatprep.subr.mxu0 0.0
  %545 = vmatpush1.msra.mxu0 0.0
  %546 = vmatprep.subr.mxu0 0.0
  %547 = vmatpush1.msra.mxu0 0.0
  %548 = vmatprep.subr.mxu0 0.0
  %549 = vmatpush1.msra.mxu0 0.0
  %550 = vmatprep.subr.mxu0 0.0
  %551 = vmatpush1.msra.mxu0 0.0
  %552 = vmatprep.subr.mxu0 0.0
  %553 = vmatpush1.msra.mxu0 0.0
  %554 = vmatprep.subr.mxu0 0.0
  %555 = vmatpush1.msra.mxu0 0.0
  %556 = vmatprep.subr.mxu0 0.0
  %557 = vmatpush1.msra.mxu0 0.0
  %558 = vmatprep.subr.mxu0 0.0
  %559 = vmatpush1.msra.mxu0 0.0
  %560 = vmatprep.subr.mxu0 0.0
  %561 = vmatpush1.msra.mxu0 0.0
  %562 = vmatprep.subr.mxu0 0.0
  %563 = vmatpush1.msra.mxu0 0.0
  %564 = vmatprep.subr.mxu0 0.0
  %565 = vmatpush1.msra.mxu0 0.0
  %566 = vmatprep.subr.mxu0 0.0
  %567 = vmatpush1.msra.mxu0 0.0
  %568 = vmatprep.subr.mxu0 0.0
  %569 = vmatpush1.msra.mxu0 0.0
  %570 = vmatprep.subr.mxu0 0.0
  %571 = vmatpush1.msra.mxu0 0.0
  %572 = vmatprep.subr.mxu0 0.0
  %573 = vmatpush1.msra.mxu0 0.0
  %574 = vmatprep.subr.mxu0 0.0
  %575 = vmatpush1.msra.mxu0 0.0
  %576 = vmatprep.subr.mxu0 0.0
  %577 = vmatpush1.msra.mxu0 0.0
  %578 = vmatprep.subr.mxu0 0.0
  %579 = vmatpush1.msra.mxu0 0.0
  %580 = vmatprep.subr.mxu0 0.0
  %581 = vmatpush1.msra.mxu0 0.0
  %582 = vmatprep.subr.mxu0 0.0
  %583 = vmatpush1.msra.mxu0 0.0
  %584 = vmatprep.subr.mxu0 0.0
  %585 = vmatpush1.msra.mxu0 0.0
  %586 = vmatprep.subr.mxu0 0.0
  %587 = vmatpush1.msra.mxu0 0.0
  %588 = vmatprep.subr.mxu0 0.0
  %589 = vmatpush1.msra.mxu0 0.0
  %590 = vmatprep.subr.mxu0 0.0
  %591 = vmatpush1.msra.mxu0 0.0
  %592 = vmatprep.subr.mxu0 0.0
  %593 = vmatpush1.msra.mxu0 0.0
  %594 = vmatprep.subr.mxu0 0.0
  %595 = vmatpush1.msra.mxu0 0.0
  %596 = vmatprep.mubr.f32.mxu0 0.0
  %597 = vmatmul.mubr.f32.gmra.mrb[0].mxu0 %v50
  %v598 = vpop.f32.mrb[0].mxu0
  %v599 = vadd.f32 0.0, %v598
  %v600 = vpop.f32.mrb[0].mxu0
  %601 = vmatprep.mubr.f32.mxu0 0.0
  %602 = vmatmul.mubr.f32.gmra.mrb[0].mxu0 %v53
  %v603 = vpop.f32.mrb[0].mxu0
  %v604 = vadd.f32 0.0, %v603
  %v605 = vpop.f32.mrb[0].mxu0
  %606 = vmatprep.mubr.f32.mxu0 0.0
  %607 = vmatmul.mubr.f32.gmra.mrb[0].mxu0 %v56
  %v608 = vpop.f32.mrb[0].mxu0
  %v609 = vadd.f32 0.0, %v608
  %v610 = vpop.f32.mrb[0].mxu0
  %611 = vmatprep.mubr.f32.mxu0 0.0
  %612 = vmatmul.mubr.f32.gmra.mrb[0].mxu0 %v59
  %v613 = vpop.f32.mrb[0].mxu0
  %v614 = vadd.f32 0.0, %v613
  %v615 = vpop.f32.mrb[0].mxu0
  %616 = vmatprep.mubr.f32.mxu0 0.0
  %617 = vmatmul.mubr.f32.gmra.mrb[0].mxu0 %v62
  %v618 = vpop.f32.mrb[0].mxu0
  %v619 = vadd.f32 0.0, %v618
  %v620 = vpop.f32.mrb[0].mxu0
  %621 = vmatprep.mubr.f32.mxu0 0.0
  %622 = vmatmul.mubr.f32.gmra.mrb[0].mxu0 %v65
  %v623 = vpop.f32.mrb[0].mxu0
  %v624 = vadd.f32 0.0, %v623
  %v625 = vpop.f32.mrb[0].mxu0
  %626 = vmatprep.mubr.f32.mxu0 0.0
  %627 = vmatmul.mubr.f32.gmra.mrb[0].mxu0 %v68
  %v628 = vpop.f32.mrb[0].mxu0
  %v629 = vadd.f32 0.0, %v628
  %v630 = vpop.f32.mrb[0].mxu0
  %631 = vmatprep.mubr.f32.mxu0 0.0
  %632 = vmatmul.mubr.f32.gmra.mrb[0].mxu0 %v71
  %v633 = vpop.f32.mrb[0].mxu0
  %v634 = vadd.f32 0.0, %v633
  %v635 = vpop.f32.mrb[0].mxu0
  %636 = vmatprep.mubr.f32.mxu0 0.0
  %637 = vmatmul.mubr.f32.gmra.mrb[0].mxu0 %v74
  %v638 = vpop.f32.mrb[0].mxu0
  %v639 = vadd.f32 0.0, %v638
  %v640 = vpop.f32.mrb[0].mxu0
  %641 = vmatprep.mubr.f32.mxu0 0.0
  %642 = vmatmul.mubr.f32.gmra.mrb[0].mxu0 %v77
  %v643 = vpop.f32.mrb[0].mxu0
  %v644 = vadd.f32 0.0, %v643
  %v645 = vpop.f32.mrb[0].mxu0
  %646 = vmatprep.mubr.f32.mxu0 0.0
  %647 = vmatmul.mubr.f32.gmra.mrb[0].mxu0 %v80
  %v648 = vpop.f32.mrb[0].mxu0
  %v649 = vadd.f32 0.0, %v648
  %v650 = vpop.f32.mrb[0].mxu0
  %651 = vmatprep.mubr.f32.mxu0 0.0
  %652 = vmatmul.mubr.f32.gmra.mrb[0].mxu0 %v83
  %v653 = vpop.f32.mrb[0].mxu0
  %v654 = vadd.f32 0.0, %v653
  %v655 = vpop.f32.mrb[0].mxu0
  %656 = vdwg.mxu0
  %v657 = vld [vmem:[%s4] sm:$0x3]
  %s658 = scalar_lea.vmem %s4, 2
  %v659 = vld [vmem:[%s658] sm:$0x3]
  %vm660 = vcmask 15360
  %v662 = vsel %vm660, %v619, 0
  %v665 = vsel %vm660, %v624, 0
  %v668 = vsel %vm660, %v629, 0
  %v671 = vsel %vm660, %v634, 0
  %vm673 = vcmask 1041408
  %v675 = vsel %vm673, %v659, 0
  %677 = vmatprep.subr.mxu0 0.0
  %678 = vmatpush1.msra.mxu0 %v675
  %679 = vmatprep.subr.mxu0 0.0
  %680 = vmatpush1.msra.mxu0 0.0
  %681 = vmatprep.subr.mxu0 0.0
  %682 = vmatpush1.msra.mxu0 0.0
  %683 = vmatprep.subr.mxu0 0.0
  %684 = vmatpush1.msra.mxu0 0.0
  %685 = vmatprep.subr.mxu0 0.0
  %686 = vmatpush1.msra.mxu0 0.0
  %687 = vmatprep.subr.mxu0 0.0
  %688 = vmatpush1.msra.mxu0 0.0
  %689 = vmatprep.subr.mxu0 0.0
  %690 = vmatpush1.msra.mxu0 0.0
  %691 = vmatprep.subr.mxu0 0.0
  %692 = vmatpush1.msra.mxu0 0.0
  %693 = vmatprep.subr.mxu0 0.0
  %694 = vmatpush1.msra.mxu0 0.0
  %695 = vmatprep.subr.mxu0 0.0
  %696 = vmatpush1.msra.mxu0 0.0
  %697 = vmatprep.subr.mxu0 0.0
  %698 = vmatpush1.msra.mxu0 0.0
  %699 = vmatprep.subr.mxu0 0.0
  %700 = vmatpush1.msra.mxu0 0.0
  %701 = vmatprep.subr.mxu0 0.0
  %702 = vmatpush1.msra.mxu0 0.0
  %703 = vmatprep.subr.mxu0 0.0
  %704 = vmatpush1.msra.mxu0 0.0
  %705 = vmatprep.subr.mxu0 0.0
  %706 = vmatpush1.msra.mxu0 0.0
  %707 = vmatprep.subr.mxu0 0.0
  %708 = vmatpush1.msra.mxu0 0.0
  %709 = vmatprep.subr.mxu0 0.0
  %710 = vmatpush1.msra.mxu0 0.0
  %711 = vmatprep.subr.mxu0 0.0
  %712 = vmatpush1.msra.mxu0 0.0
  %713 = vmatprep.subr.mxu0 0.0
  %714 = vmatpush1.msra.mxu0 0.0
  %715 = vmatprep.subr.mxu0 0.0
  %716 = vmatpush1.msra.mxu0 0.0
  %717 = vmatprep.subr.mxu0 0.0
  %718 = vmatpush1.msra.mxu0 0.0
  %719 = vmatprep.subr.mxu0 0.0
  %720 = vmatpush1.msra.mxu0 0.0
  %721 = vmatprep.subr.mxu0 0.0
  %722 = vmatpush1.msra.mxu0 0.0
  %723 = vmatprep.subr.mxu0 0.0
  %724 = vmatpush1.msra.mxu0 0.0
  %725 = vmatprep.subr.mxu0 0.0
  %726 = vmatpush1.msra.mxu0 0.0
  %727 = vmatprep.subr.mxu0 0.0
  %728 = vmatpush1.msra.mxu0 0.0
  %729 = vmatprep.subr.mxu0 0.0
  %730 = vmatpush1.msra.mxu0 0.0
  %731 = vmatprep.subr.mxu0 0.0
  %732 = vmatpush1.msra.mxu0 0.0
  %733 = vmatprep.subr.mxu0 0.0
  %734 = vmatpush1.msra.mxu0 0.0
  %735 = vmatprep.subr.mxu0 0.0
  %736 = vmatpush1.msra.mxu0 0.0
  %737 = vmatprep.subr.mxu0 0.0
  %738 = vmatpush1.msra.mxu0 0.0
  %739 = vmatprep.subr.mxu0 0.0
  %740 = vmatpush1.msra.mxu0 0.0
  %741 = vmatprep.mubr.f32.mxu0 0.0
  %742 = vmatmul.mubr.f32.gmra.mrb[0].mxu0 %v662
  %v743 = vpop.f32.mrb[0].mxu0
  %v744 = vadd.f32 0.0, %v743
  %v745 = vpop.f32.mrb[0].mxu0
  %746 = vmatprep.mubr.f32.mxu0 0.0
  %747 = vmatmul.mubr.f32.gmra.mrb[0].mxu0 %v665
  %v748 = vpop.f32.mrb[0].mxu0
  %v749 = vadd.f32 0.0, %v748
  %v750 = vpop.f32.mrb[0].mxu0
  %751 = vmatprep.mubr.f32.mxu0 0.0
  %752 = vmatmul.mubr.f32.gmra.mrb[0].mxu0 %v668
  %v753 = vpop.f32.mrb[0].mxu0
  %v754 = vadd.f32 0.0, %v753
  %v755 = vpop.f32.mrb[0].mxu0
  %756 = vmatprep.mubr.f32.mxu0 0.0
  %757 = vmatmul.mubr.f32.gmra.mrb[0].mxu0 %v671
  %v758 = vpop.f32.mrb[0].mxu0
  %v759 = vadd.f32 0.0, %v758
  %v760 = vpop.f32.mrb[0].mxu0
  %761 = vdwg.mxu0
  %v763 = vsel %vm660, %v599, 0
  %v766 = vsel %vm660, %v604, 0
  %v769 = vsel %vm660, %v609, 0
  %v772 = vsel %vm660, %v614, 0
  %v775 = vsel %vm673, %v657, 0
  %777 = vmatprep.subr.mxu0 0.0
  %778 = vmatpush1.msra.mxu0 %v775
  %779 = vmatprep.subr.mxu0 0.0
  %780 = vmatpush1.msra.mxu0 0.0
  %781 = vmatprep.subr.mxu0 0.0
  %782 = vmatpush1.msra.mxu0 0.0
  %783 = vmatprep.subr.mxu0 0.0
  %784 = vmatpush1.msra.mxu0 0.0
  %785 = vmatprep.subr.mxu0 0.0
  %786 = vmatpush1.msra.mxu0 0.0
  %787 = vmatprep.subr.mxu0 0.0
  %788 = vmatpush1.msra.mxu0 0.0
  %789 = vmatprep.subr.mxu0 0.0
  %790 = vmatpush1.msra.mxu0 0.0
  %791 = vmatprep.subr.mxu0 0.0
  %792 = vmatpush1.msra.mxu0 0.0
  %793 = vmatprep.subr.mxu0 0.0
  %794 = vmatpush1.msra.mxu0 0.0
  %795 = vmatprep.subr.mxu0 0.0
  %796 = vmatpush1.msra.mxu0 0.0
  %797 = vmatprep.subr.mxu0 0.0
  %798 = vmatpush1.msra.mxu0 0.0
  %799 = vmatprep.subr.mxu0 0.0
  %800 = vmatpush1.msra.mxu0 0.0
  %801 = vmatprep.subr.mxu0 0.0
  %802 = vmatpush1.msra.mxu0 0.0
  %803 = vmatprep.subr.mxu0 0.0
  %804 = vmatpush1.msra.mxu0 0.0
  %805 = vmatprep.subr.mxu0 0.0
  %806 = vmatpush1.msra.mxu0 0.0
  %807 = vmatprep.subr.mxu0 0.0
  %808 = vmatpush1.msra.mxu0 0.0
  %809 = vmatprep.subr.mxu0 0.0
  %810 = vmatpush1.msra.mxu0 0.0
  %811 = vmatprep.subr.mxu0 0.0
  %812 = vmatpush1.msra.mxu0 0.0
  %813 = vmatprep.subr.mxu0 0.0
  %814 = vmatpush1.msra.mxu0 0.0
  %815 = vmatprep.subr.mxu0 0.0
  %816 = vmatpush1.msra.mxu0 0.0
  %817 = vmatprep.subr.mxu0 0.0
  %818 = vmatpush1.msra.mxu0 0.0
  %819 = vmatprep.subr.mxu0 0.0
  %820 = vmatpush1.msra.mxu0 0.0
  %821 = vmatprep.subr.mxu0 0.0
  %822 = vmatpush1.msra.mxu0 0.0
  %823 = vmatprep.subr.mxu0 0.0
  %824 = vmatpush1.msra.mxu0 0.0
  %825 = vmatprep.subr.mxu0 0.0
  %826 = vmatpush1.msra.mxu0 0.0
  %827 = vmatprep.subr.mxu0 0.0
  %828 = vmatpush1.msra.mxu0 0.0
  %829 = vmatprep.subr.mxu0 0.0
  %830 = vmatpush1.msra.mxu0 0.0
  %831 = vmatprep.subr.mxu0 0.0
  %832 = vmatpush1.msra.mxu0 0.0
  %833 = vmatprep.subr.mxu0 0.0
  %834 = vmatpush1.msra.mxu0 0.0
  %835 = vmatprep.subr.mxu0 0.0
  %836 = vmatpush1.msra.mxu0 0.0
  %837 = vmatprep.subr.mxu0 0.0
  %838 = vmatpush1.msra.mxu0 0.0
  %839 = vmatprep.subr.mxu0 0.0
  %840 = vmatpush1.msra.mxu0 0.0
  %841 = vmatprep.mubr.f32.mxu0 0.0
  %842 = vmatmul.mubr.f32.gmra.mrb[0].mxu0 %v763
  %v843 = vpop.f32.mrb[0].mxu0
  %v844 = vadd.f32 %v744, %v843
  %v845 = vpop.f32.mrb[0].mxu0
  %846 = vmatprep.mubr.f32.mxu0 0.0
  %847 = vmatmul.mubr.f32.gmra.mrb[0].mxu0 %v766
  %v848 = vpop.f32.mrb[0].mxu0
  %v849 = vadd.f32 %v749, %v848
  %v850 = vpop.f32.mrb[0].mxu0
  %851 = vmatprep.mubr.f32.mxu0 0.0
  %852 = vmatmul.mubr.f32.gmra.mrb[0].mxu0 %v769
  %v853 = vpop.f32.mrb[0].mxu0
  %v854 = vadd.f32 %v754, %v853
  %v855 = vpop.f32.mrb[0].mxu0
  %856 = vmatprep.mubr.f32.mxu0 0.0
  %857 = vmatmul.mubr.f32.gmra.mrb[0].mxu0 %v772
  %v858 = vpop.f32.mrb[0].mxu0
  %v859 = vadd.f32 %v759, %v858
  %v860 = vpop.f32.mrb[0].mxu0
  %861 = vdwg.mxu0
  %s862 = scalar_lea.vmem %s4, 4
  %v863 = vld [vmem:[%s862] sm:$0x3]
  %v865 = vsel %vm660, %v639, 0
  %v868 = vsel %vm660, %v644, 0
  %v871 = vsel %vm660, %v649, 0
  %v874 = vsel %vm660, %v654, 0
  %v877 = vsel %vm673, %v863, 0
  %879 = vmatprep.subr.mxu0 0.0
  %880 = vmatpush1.msra.mxu0 %v877
  %881 = vmatprep.subr.mxu0 0.0
  %882 = vmatpush1.msra.mxu0 0.0
  %883 = vmatprep.subr.mxu0 0.0
  %884 = vmatpush1.msra.mxu0 0.0
  %885 = vmatprep.subr.mxu0 0.0
  %886 = vmatpush1.msra.mxu0 0.0
  %887 = vmatprep.subr.mxu0 0.0
  %888 = vmatpush1.msra.mxu0 0.0
  %889 = vmatprep.subr.mxu0 0.0
  %890 = vmatpush1.msra.mxu0 0.0
  %891 = vmatprep.subr.mxu0 0.0
  %892 = vmatpush1.msra.mxu0 0.0
  %893 = vmatprep.subr.mxu0 0.0
  %894 = vmatpush1.msra.mxu0 0.0
  %895 = vmatprep.subr.mxu0 0.0
  %896 = vmatpush1.msra.mxu0 0.0
  %897 = vmatprep.subr.mxu0 0.0
  %898 = vmatpush1.msra.mxu0 0.0
  %899 = vmatprep.subr.mxu0 0.0
  %900 = vmatpush1.msra.mxu0 0.0
  %901 = vmatprep.subr.mxu0 0.0
  %902 = vmatpush1.msra.mxu0 0.0
  %903 = vmatprep.subr.mxu0 0.0
  %904 = vmatpush1.msra.mxu0 0.0
  %905 = vmatprep.subr.mxu0 0.0
  %906 = vmatpush1.msra.mxu0 0.0
  %907 = vmatprep.subr.mxu0 0.0
  %908 = vmatpush1.msra.mxu0 0.0
  %909 = vmatprep.subr.mxu0 0.0
  %910 = vmatpush1.msra.mxu0 0.0
  %911 = vmatprep.subr.mxu0 0.0
  %912 = vmatpush1.msra.mxu0 0.0
  %913 = vmatprep.subr.mxu0 0.0
  %914 = vmatpush1.msra.mxu0 0.0
  %915 = vmatprep.subr.mxu0 0.0
  %916 = vmatpush1.msra.mxu0 0.0
  %917 = vmatprep.subr.mxu0 0.0
  %918 = vmatpush1.msra.mxu0 0.0
  %919 = vmatprep.subr.mxu0 0.0
  %920 = vmatpush1.msra.mxu0 0.0
  %921 = vmatprep.subr.mxu0 0.0
  %922 = vmatpush1.msra.mxu0 0.0
  %923 = vmatprep.subr.mxu0 0.0
  %924 = vmatpush1.msra.mxu0 0.0
  %925 = vmatprep.subr.mxu0 0.0
  %926 = vmatpush1.msra.mxu0 0.0
  %927 = vmatprep.subr.mxu0 0.0
  %928 = vmatpush1.msra.mxu0 0.0
  %929 = vmatprep.subr.mxu0 0.0
  %930 = vmatpush1.msra.mxu0 0.0
  %931 = vmatprep.subr.mxu0 0.0
  %932 = vmatpush1.msra.mxu0 0.0
  %933 = vmatprep.subr.mxu0 0.0
  %934 = vmatpush1.msra.mxu0 0.0
  %935 = vmatprep.subr.mxu0 0.0
  %936 = vmatpush1.msra.mxu0 0.0
  %937 = vmatprep.subr.mxu0 0.0
  %938 = vmatpush1.msra.mxu0 0.0
  %939 = vmatprep.subr.mxu0 0.0
  %940 = vmatpush1.msra.mxu0 0.0
  %941 = vmatprep.subr.mxu0 0.0
  %942 = vmatpush1.msra.mxu0 0.0
  %943 = vmatprep.mubr.f32.mxu0 0.0
  %944 = vmatmul.mubr.f32.gmra.mrb[0].mxu0 %v865
  %v945 = vpop.f32.mrb[0].mxu0
  %v946 = vadd.f32 0.0, %v945
  %v947 = vpop.f32.mrb[0].mxu0
  %948 = vmatprep.mubr.f32.mxu0 0.0
  %949 = vmatmul.mubr.f32.gmra.mrb[0].mxu0 %v868
  %v950 = vpop.f32.mrb[0].mxu0
  %v951 = vadd.f32 0.0, %v950
  %v952 = vpop.f32.mrb[0].mxu0
  %953 = vmatprep.mubr.f32.mxu0 0.0
  %954 = vmatmul.mubr.f32.gmra.mrb[0].mxu0 %v871
  %v955 = vpop.f32.mrb[0].mxu0
  %v956 = vadd.f32 0.0, %v955
  %v957 = vpop.f32.mrb[0].mxu0
  %958 = vmatprep.mubr.f32.mxu0 0.0
  %959 = vmatmul.mubr.f32.gmra.mrb[0].mxu0 %v874
  %v960 = vpop.f32.mrb[0].mxu0
  %v961 = vadd.f32 0.0, %v960
  %v962 = vpop.f32.mrb[0].mxu0
  %963 = vdwg.mxu0
  %v964 = vadd.f32 %v844, %v946
  %v965 = vadd.f32 %v849, %v951
  %v966 = vadd.f32 %v854, %v956
  %v967 = vadd.f32 %v859, %v961
  %v968 = vld [vmem:[%s5] sm:$0x1]
  %v970 = vlaneseq
  %v971 = vshrl.u32 %v970, 7
  %v972 = vsub.s32 0, %v971
  %v973 = vrot.slane %v968, %v972
  %v975 = vadd.f32 %v964, %v973
  %v976 = vadd.f32 %v965, %v973
  %v977 = vadd.f32 %v966, %v973
  %v978 = vadd.f32 %v967, %v973
  %v979 = vld [vmem:[%s6] sm:$0x3]
  %v980 = vld [vmem:[%s7] sm:$0x3]
  %v982 = vsel %vm660, %v977, 0
  %v985 = vsel %vm660, %v978, 0
  %v988 = vsel %vm673, %v980, 0
  %990 = vmatprep.subr.mxu0 0.0
  %991 = vmatpush1.msra.mxu0 %v988
  %992 = vmatprep.subr.mxu0 0.0
  %993 = vmatpush1.msra.mxu0 0.0
  %994 = vmatprep.subr.mxu0 0.0
  %995 = vmatpush1.msra.mxu0 0.0
  %996 = vmatprep.subr.mxu0 0.0
  %997 = vmatpush1.msra.mxu0 0.0
  %998 = vmatprep.subr.mxu0 0.0
  %999 = vmatpush1.msra.mxu0 0.0
  %1000 = vmatprep.subr.mxu0 0.0
  %1001 = vmatpush1.msra.mxu0 0.0
  %1002 = vmatprep.subr.mxu0 0.0
  %1003 = vmatpush1.msra.mxu0 0.0
  %1004 = vmatprep.subr.mxu0 0.0
  %1005 = vmatpush1.msra.mxu0 0.0
  %1006 = vmatprep.subr.mxu0 0.0
  %1007 = vmatpush1.msra.mxu0 0.0
  %1008 = vmatprep.subr.mxu0 0.0
  %1009 = vmatpush1.msra.mxu0 0.0
  %1010 = vmatprep.subr.mxu0 0.0
  %1011 = vmatpush1.msra.mxu0 0.0
  %1012 = vmatprep.subr.mxu0 0.0
  %1013 = vmatpush1.msra.mxu0 0.0
  %1014 = vmatprep.subr.mxu0 0.0
  %1015 = vmatpush1.msra.mxu0 0.0
  %1016 = vmatprep.subr.mxu0 0.0
  %1017 = vmatpush1.msra.mxu0 0.0
  %1018 = vmatprep.subr.mxu0 0.0
  %1019 = vmatpush1.msra.mxu0 0.0
  %1020 = vmatprep.subr.mxu0 0.0
  %1021 = vmatpush1.msra.mxu0 0.0
  %1022 = vmatprep.subr.mxu0 0.0
  %1023 = vmatpush1.msra.mxu0 0.0
  %1024 = vmatprep.subr.mxu0 0.0
  %1025 = vmatpush1.msra.mxu0 0.0
  %1026 = vmatprep.subr.mxu0 0.0
  %1027 = vmatpush1.msra.mxu0 0.0
  %1028 = vmatprep.subr.mxu0 0.0
  %1029 = vmatpush1.msra.mxu0 0.0
  %1030 = vmatprep.subr.mxu0 0.0
  %1031 = vmatpush1.msra.mxu0 0.0
  %1032 = vmatprep.subr.mxu0 0.0
  %1033 = vmatpush1.msra.mxu0 0.0
  %1034 = vmatprep.subr.mxu0 0.0
  %1035 = vmatpush1.msra.mxu0 0.0
  %1036 = vmatprep.subr.mxu0 0.0
  %1037 = vmatpush1.msra.mxu0 0.0
  %1038 = vmatprep.subr.mxu0 0.0
  %1039 = vmatpush1.msra.mxu0 0.0
  %1040 = vmatprep.subr.mxu0 0.0
  %1041 = vmatpush1.msra.mxu0 0.0
  %1042 = vmatprep.subr.mxu0 0.0
  %1043 = vmatpush1.msra.mxu0 0.0
  %1044 = vmatprep.subr.mxu0 0.0
  %1045 = vmatpush1.msra.mxu0 0.0
  %1046 = vmatprep.subr.mxu0 0.0
  %1047 = vmatpush1.msra.mxu0 0.0
  %1048 = vmatprep.subr.mxu0 0.0
  %1049 = vmatpush1.msra.mxu0 0.0
  %1050 = vmatprep.subr.mxu0 0.0
  %1051 = vmatpush1.msra.mxu0 0.0
  %1052 = vmatprep.subr.mxu0 0.0
  %1053 = vmatpush1.msra.mxu0 0.0
  %1054 = vmatprep.mubr.f32.mxu0 0.0
  %1055 = vmatmul.mubr.f32.gmra.mrb[0].mxu0 %v982
  %v1056 = vpop.f32.mrb[0].mxu0
  %v1057 = vadd.f32 0.0, %v1056
  %v1058 = vpop.f32.mrb[0].mxu0
  %1059 = vmatprep.mubr.f32.mxu0 0.0
  %1060 = vmatmul.mubr.f32.gmra.mrb[0].mxu0 %v985
  %v1061 = vpop.f32.mrb[0].mxu0
  %v1062 = vadd.f32 0.0, %v1061
  %v1063 = vpop.f32.mrb[0].mxu0
  %1064 = vdwg.mxu0
  %v1066 = vsel %vm660, %v975, 0
  %v1069 = vsel %vm660, %v976, 0
  %v1072 = vsel %vm673, %v979, 0
  %1074 = vmatprep.subr.mxu0 0.0
  %1075 = vmatpush1.msra.mxu0 %v1072
  %1076 = vmatprep.subr.mxu0 0.0
  %1077 = vmatpush1.msra.mxu0 0.0
  %1078 = vmatprep.subr.mxu0 0.0
  %1079 = vmatpush1.msra.mxu0 0.0
  %1080 = vmatprep.subr.mxu0 0.0
  %1081 = vmatpush1.msra.mxu0 0.0
  %1082 = vmatprep.subr.mxu0 0.0
  %1083 = vmatpush1.msra.mxu0 0.0
  %1084 = vmatprep.subr.mxu0 0.0
  %1085 = vmatpush1.msra.mxu0 0.0
  %1086 = vmatprep.subr.mxu0 0.0
  %1087 = vmatpush1.msra.mxu0 0.0
  %1088 = vmatprep.subr.mxu0 0.0
  %1089 = vmatpush1.msra.mxu0 0.0
  %1090 = vmatprep.subr.mxu0 0.0
  %1091 = vmatpush1.msra.mxu0 0.0
  %1092 = vmatprep.subr.mxu0 0.0
  %1093 = vmatpush1.msra.mxu0 0.0
  %1094 = vmatprep.subr.mxu0 0.0
  %1095 = vmatpush1.msra.mxu0 0.0
  %1096 = vmatprep.subr.mxu0 0.0
  %1097 = vmatpush1.msra.mxu0 0.0
  %1098 = vmatprep.subr.mxu0 0.0
  %1099 = vmatpush1.msra.mxu0 0.0
  %1100 = vmatprep.subr.mxu0 0.0
  %1101 = vmatpush1.msra.mxu0 0.0
  %1102 = vmatprep.subr.mxu0 0.0
  %1103 = vmatpush1.msra.mxu0 0.0
  %1104 = vmatprep.subr.mxu0 0.0
  %1105 = vmatpush1.msra.mxu0 0.0
  %1106 = vmatprep.subr.mxu0 0.0
  %1107 = vmatpush1.msra.mxu0 0.0
  %1108 = vmatprep.subr.mxu0 0.0
  %1109 = vmatpush1.msra.mxu0 0.0
  %1110 = vmatprep.subr.mxu0 0.0
  %1111 = vmatpush1.msra.mxu0 0.0
  %1112 = vmatprep.subr.mxu0 0.0
  %1113 = vmatpush1.msra.mxu0 0.0
  %1114 = vmatprep.subr.mxu0 0.0
  %1115 = vmatpush1.msra.mxu0 0.0
  %1116 = vmatprep.subr.mxu0 0.0
  %1117 = vmatpush1.msra.mxu0 0.0
  %1118 = vmatprep.subr.mxu0 0.0
  %1119 = vmatpush1.msra.mxu0 0.0
  %1120 = vmatprep.subr.mxu0 0.0
  %1121 = vmatpush1.msra.mxu0 0.0
  %1122 = vmatprep.subr.mxu0 0.0
  %1123 = vmatpush1.msra.mxu0 0.0
  %1124 = vmatprep.subr.mxu0 0.0
  %1125 = vmatpush1.msra.mxu0 0.0
  %1126 = vmatprep.subr.mxu0 0.0
  %1127 = vmatpush1.msra.mxu0 0.0
  %1128 = vmatprep.subr.mxu0 0.0
  %1129 = vmatpush1.msra.mxu0 0.0
  %1130 = vmatprep.subr.mxu0 0.0
  %1131 = vmatpush1.msra.mxu0 0.0
  %1132 = vmatprep.subr.mxu0 0.0
  %1133 = vmatpush1.msra.mxu0 0.0
  %1134 = vmatprep.subr.mxu0 0.0
  %1135 = vmatpush1.msra.mxu0 0.0
  %1136 = vmatprep.subr.mxu0 0.0
  %1137 = vmatpush1.msra.mxu0 0.0
  %1138 = vmatprep.mubr.f32.mxu0 0.0
  %1139 = vmatmul.mubr.f32.gmra.mrb[0].mxu0 %v1066
  %v1140 = vpop.f32.mrb[0].mxu0
  %v1141 = vadd.f32 %v1057, %v1140
  %v1142 = vpop.f32.mrb[0].mxu0
  %1143 = vmatprep.mubr.f32.mxu0 0.0
  %1144 = vmatmul.mubr.f32.gmra.mrb[0].mxu0 %v1069
  %v1145 = vpop.f32.mrb[0].mxu0
  %v1146 = vadd.f32 %v1062, %v1145
  %v1147 = vpop.f32.mrb[0].mxu0
  %1148 = vdwg.mxu0
  %v1149 = vld [vmem:[%s8] sm:$0x1]
  %v1151 = vlaneseq
  %v1152 = vshrl.u32 %v1151, 7
  %v1153 = vsub.s32 0, %v1152
  %v1154 = vrot.slane %v1149, %v1153
  %v1156 = vadd.f32 %v1141, %v1154
  %v1157 = vadd.f32 %v1146, %v1154
  %v1158 = vsel %vm660, %v1156, -inf
  %1159 = vmax.xlane.f32.xlu0 %v1158
  %v1160 = vpop.xlane.xlu0 %1159
  %v1161 = vsel %vm660, %v1157, -inf
  %1162 = vmax.xlane.f32.xlu0 %v1161
  %v1163 = vpop.xlane.xlu0 %1162
  %v1164 = vsub.f32 %v1156, %v1160
  %v1165 = vsub.f32 %v1157, %v1163
  %v1166 = vmul.f32 %v1164, 1.442695
  %v1167 = vpow.pop %v1166
  %v1168 = vmul.f32 %v1165, 1.442695
  %v1169 = vpow.pop %v1168
  %v1170 = vsel %vm660, %v1167, 0.0
  %1171 = vadd.xlane.f32.xlu0 %v1170
  %v1172 = vpop.xlane.xlu0 %1171
  %v1173 = vsel %vm660, %v1169, 0.0
  %1174 = vadd.xlane.f32.xlu0 %v1173
  %v1175 = vpop.xlane.xlu0 %1174
  %v1176 = vlog2.pop %v1172
  %v1177 = vmul.f32 %v1176, 0.6931472
  %v1178 = vlog2.pop %v1175
  %v1179 = vmul.f32 %v1178, 0.6931472
  %v1180 = vsub.f32 %v1164, %v1177
  %v1181 = vsub.f32 %v1165, %v1179
  %1182 = vst.msk [vmem:[%s9] sm:$0xff] %vm660, %v1180
  %1183 = vst.msk [vmem:[%s9 + $0x8] sm:$0xff] %vm660, %v1181
  // Predicated region
  $region38: #{chebnet_forward.1} parent=0 // pred_check
    _
  $region39: #{chebnet_forward.1} parent=0 // pred_check_branch
    %1185 = sbr.rel (0) target = $region41
  $region40: #{chebnet_forward.1} parent=0 // pred_region
    _
  $region41: #{chebnet_forward.1} parent=0 // pred_fallthru
    _
  // Predicated region
  $region42: #{chebnet_forward.1} parent=0 // pred_check
    _
  $region43: #{chebnet_forward.1} parent=0 // pred_check_branch
    %1187 = sbr.rel (0) target = $region45
  $region44: #{chebnet_forward.1} parent=0 // pred_region
    _
  $region45: #{chebnet_forward.1} parent=0 // pred_fallthru
    _

</llo_original>
